<compile_context>
chip_gen: v6e
topology: v6e:2x2x1
jax: 0.10.0
libtpu: 0.0.40
codegen_flags: <defaults>
</compile_context>

<pallas_src>
import math

import jax
import jax.numpy as jnp
from jax import lax
from jax.experimental import pallas as pl
from jax.experimental.pallas import tpu as pltpu

_EPS = 1e-8          # nn.CosineSimilarity default eps (per-norm clamp)
_EPS2 = _EPS * _EPS  # rsqrt(max(ss, eps^2)) == 1 / max(norm, eps)
_MIB = 1 << 20


def _round_up(n, m):
    return ((n + m - 1) // m) * m


def _cdiv(a, b):
    return -(-a // b)


def _sublane_align(itemsize):
    # f32 -> 8, bf16 -> 16, int8/fp8 -> 32 (sublane packing)
    return max(8, 32 // max(int(itemsize), 1))


def _pick_tile(n_rows, h, itemsize, align, cap, budget_bytes):
    """Row tile: multiple of `align`, <= cap, ~budget_bytes of (rows, h) data."""
    per_row = max(1, h * itemsize)
    t = min(cap, max(align, budget_bytes // per_row))
    t = max(align, (t // align) * align)
    t = min(t, _round_up(max(n_rows, 1), align))
    # Prefer a tile that divides n_rows (skips the jnp.pad HBM round-trip),
    # as long as it stays within 2x of the budget-derived tile.
    if n_rows % t != 0:
        d = t
        while d >= align:
            if n_rows % d == 0 and 2 * d >= t:
                return d
            d -= align
    return t


def _ensure_two_blocks(n_rows, t, align):
    """Shrink the tile if that yields >= 2 grid blocks (megacore / v7x 2 TCs)."""
    if _cdiv(n_rows, t) >= 2:
        return t
    t2 = _round_up(max(1, _cdiv(n_rows, 2)), align)
    if t2 >= align and _cdiv(n_rows, t2) >= 2:
        return t2
    return t


def _vmem_limit_bytes(*buffer_bytes):
    # Double-buffered pipeline copies of each buffer + margin; clamp to a range
    # safe on v5e/v6e (128 MiB physical) and v7x (64 MiB physical).
    need = 2 * int(sum(buffer_bytes)) + 4 * _MIB
    return int(min(48 * _MIB, max(24 * _MIB, need)))


def _inv_norm_rows(m):
    """(N, H) -> (N, 1) f32 inverse norm, 1 / max(||row||, eps)."""
    ss = jnp.sum(jnp.square(m.astype(jnp.float32)), axis=-1, keepdims=True)
    return lax.rsqrt(jnp.maximum(ss, _EPS2))


# ---------------------------------------------------------------------------
# Path 1: outer-product broadcasting -> raw-dtype MXU matmul + post-scale
# ---------------------------------------------------------------------------
def _outer_kernel(x_ref, y_ref, inv_nx_ref, inv_ny_ref, o_ref):
    # Raw-dtype operands straight to the MXU (bf16 stays bf16), f32 accumulate.
    sim = lax.dot_general(x_ref[...], y_ref[...], (((1,), (1,)), ((), ())),
                          preferred_element_type=jnp.float32)       # (TM, TN)
    # Post-scale with hoisted 1/||x|| (1/temp folded in) and 1/||y||.
    o_ref[...] = (sim * inv_nx_ref[...] * inv_ny_ref[...]).astype(o_ref.dtype)


def _similarity_outer(xm, ym, temp, out_dtype):
    """xm: (A, H), ym: (B, H) -> (A, B) = cos(x_i, y_j) / temp."""
    A, H = xm.shape
    B = ym.shape[0]
    dt = jnp.result_type(xm.dtype, ym.dtype)
    xm = xm.astype(dt)
    ym = ym.astype(dt)
    itemsize = jnp.dtype(dt).itemsize
    align = _sublane_align(itemsize)

    # Norm reductions hoisted out of the grid (computed once per row by XLA).
    inv_nx = _inv_norm_rows(xm) * (1.0 / float(temp))    # (A, 1), temp folded
    inv_ny = _inv_norm_rows(ym).reshape(1, B)            # (1, B), lane-major

    # Large x row tiles cut y HBM refetch; y fully VMEM-resident if it fits.
    TM = _pick_tile(A, H, itemsize, align=align, cap=1024, budget_bytes=4 * _MIB)
    TM = _ensure_two_blocks(A, TM, align)
    y_resident_bytes = _round_up(B, 128) * H * itemsize
    if y_resident_bytes <= 8 * _MIB:
        TN = _round_up(B, 128)          # single j block -> y fetched once
    else:
        TN = _pick_tile(B, H, itemsize, align=128, cap=512, budget_bytes=4 * _MIB)

    A_pad = _round_up(A, TM)
    B_pad = _round_up(B, TN)
    if A_pad != A:
        xm = jnp.pad(xm, ((0, A_pad - A), (0, 0)))
        inv_nx = jnp.pad(inv_nx, ((0, A_pad - A), (0, 0)))
    if B_pad != B:
        ym = jnp.pad(ym, ((0, B_pad - B), (0, 0)))
        inv_ny = jnp.pad(inv_ny, ((0, 0), (0, B_pad - B)))

    vmem = _vmem_limit_bytes(TM * H * itemsize, TN * H * itemsize,
                             TM * TN * jnp.dtype(out_dtype).itemsize,
                             TM * 4, TN * 4)

    out = pl.pallas_call(
        _outer_kernel,
        out_shape=jax.ShapeDtypeStruct((A_pad, B_pad), out_dtype),
        grid_spec=pl.GridSpec(
            grid=(A_pad // TM, B_pad // TN),
            in_specs=[
                pl.BlockSpec((TM, H), lambda i, j: (i, 0)),   # x: constant over j
                pl.BlockSpec((TN, H), lambda i, j: (j, 0)),   # y tile / resident
                pl.BlockSpec((TM, 1), lambda i, j: (i, 0)),   # 1/||x|| / temp
                pl.BlockSpec((1, TN), lambda i, j: (0, j)),   # 1/||y||
            ],
            out_specs=pl.BlockSpec((TM, TN), lambda i, j: (i, j)),
        ),
        compiler_params=pltpu.CompilerParams(
            dimension_semantics=("parallel", "parallel"),
            vmem_limit_bytes=vmem),
    )(xm, ym, inv_nx, inv_ny)
    return out[:A, :B]


# ---------------------------------------------------------------------------
# Path 2: general broadcasting fallback -> tiled row-wise cosine
# ---------------------------------------------------------------------------
def _make_rowwise_kernel(inv_temp: float):
    def kernel(x_ref, y_ref, o_ref):
        x = x_ref[...].astype(jnp.float32)    # (TM, H)
        y = y_ref[...].astype(jnp.float32)    # (TM, H) or (1, H) resident
        dot = jnp.sum(x * y, axis=-1, keepdims=True)
        inv_nx = lax.rsqrt(jnp.maximum(jnp.sum(x * x, axis=-1, keepdims=True), _EPS2))
        inv_ny = lax.rsqrt(jnp.maximum(jnp.sum(y * y, axis=-1, keepdims=True), _EPS2))
        # NOTE: (TM,1) output block (lane-dense rewrite would need an in-kernel
        # sublane->lane relayout); writeback here is ~1/H of input traffic.
        o_ref[...] = (dot * (inv_nx * inv_temp) * inv_ny).astype(o_ref.dtype)
    return kernel


def _similarity_rowwise(x, y, temp, out_dtype):
    H = x.shape[-1]
    lead = jnp.broadcast_shapes(x.shape[:-1], y.shape[:-1])
    M = int(math.prod(lead)) if lead else 1
    dt = jnp.result_type(x.dtype, y.dtype)
    x = x.astype(dt)
    y = y.astype(dt)

    def _is_single_row(a):
        return all(int(d) == 1 for d in a.shape[:-1])

    # Put a "single broadcast row" operand second so it stays VMEM-resident.
    if _is_single_row(x) and not _is_single_row(y):
        x, y = y, x            # cosine similarity is symmetric

    if x.shape[:-1] == lead:
        x2 = x.reshape(M, H)
    else:
        # TODO(synk): partial leading-dim broadcast of x is materialized here;
        # could be expressed with BlockSpec index maps to avoid the HBM copy.
        x2 = jnp.broadcast_to(x, lead + (H,)).reshape(M, H)

    y_resident = _is_single_row(y)
    if y_resident:
        y2 = y.reshape(1, H)
    elif y.shape[:-1] == lead:
        y2 = y.reshape(M, H)
    else:
        # TODO(synk): same as above for y.
        y2 = jnp.broadcast_to(y, lead + (H,)).reshape(M, H)

    itemsize = jnp.dtype(dt).itemsize
    align = _sublane_align(itemsize)
    TM = _pick_tile(M, H, itemsize, align=align, cap=2048, budget_bytes=4 * _MIB)
    TM = _ensure_two_blocks(M, TM, align)
    M_pad = _round_up(M, TM)
    if M_pad != M:
        # zero rows -> clamped norms -> cos 0; never reaches real output rows
        x2 = jnp.pad(x2, ((0, M_pad - M), (0, 0)))
        if not y_resident:
            y2 = jnp.pad(y2, ((0, M_pad - M), (0, 0)))

    if y_resident:
        y_spec = pl.BlockSpec((1, H), lambda i: (0, 0))
        y_tile_bytes = H * itemsize
    else:
        y_spec = pl.BlockSpec((TM, H), lambda i: (i, 0))
        y_tile_bytes = TM * H * itemsize

    vmem = _vmem_limit_bytes(TM * H * itemsize, y_tile_bytes, TM * 4)

    kernel = _make_rowwise_kernel(1.0 / float(temp))
    out = pl.pallas_call(
        kernel,
        out_shape=jax.ShapeDtypeStruct((M_pad, 1), out_dtype),
        grid_spec=pl.GridSpec(
            grid=(M_pad // TM,),
            in_specs=[pl.BlockSpec((TM, H), lambda i: (i, 0)), y_spec],
            out_specs=pl.BlockSpec((TM, 1), lambda i: (i, 0)),
        ),
        compiler_params=pltpu.CompilerParams(
            dimension_semantics=("parallel",),
            vmem_limit_bytes=vmem),
    )(x2, y2)
    return out[:M, 0].reshape(lead)


# ---------------------------------------------------------------------------
# Public wrapper (matches PyTorch Similarity.forward semantics)
# ---------------------------------------------------------------------------
def similarity(x, y, temp):
    """Cosine similarity along the last axis (with broadcasting), divided by temp."""
    out_dtype = jnp.result_type(x.dtype, y.dtype)

    # SimCSE-style outer-product broadcasting: avoid materializing the broadcast.
    if x.ndim == 3 and y.ndim == 3 and x.shape[-1] == y.shape[-1]:
        if x.shape[1] == 1 and y.shape[0] == 1:
            # x: (A,1,H), y: (1,B,H) -> (A,B)
            return _similarity_outer(x[:, 0, :], y[0, :, :], temp, out_dtype)
        if x.shape[0] == 1 and y.shape[1] == 1:
            # x: (1,A,H), y: (B,1,H) -> (B,A); cosine is symmetric
            return _similarity_outer(y[:, 0, :], x[0, :, :], temp, out_dtype)

    # General case: element-aligned (broadcasted) row-wise cosine.
    return _similarity_rowwise(x, y, temp, out_dtype)


if __name__ == "__main__":
    key = jax.random.PRNGKey(0)
    kx, ky = jax.random.split(key)

    temp = 0.05

    # --- SimCSE usage: x (B,1,H) vs y (1,B,H) -> (B,B) similarity matrix ---
    B, H = 2, 32
    x = jax.random.normal(kx, (B, 1, H), dtype=jnp.float32)
    y = jax.random.normal(ky, (1, B, H), dtype=jnp.float32)

    out = jax.block_until_ready(similarity(x, y, temp))

    xb, yb = jnp.broadcast_arrays(x, y)
    dot = jnp.sum(xb * yb, axis=-1)
    nx = jnp.maximum(jnp.linalg.norm(xb, axis=-1), _EPS)
    ny = jnp.maximum(jnp.linalg.norm(yb, axis=-1), _EPS)
    ref = dot / (nx * ny) / temp
    assert out.shape == ref.shape, (out.shape, ref.shape)
    assert jnp.allclose(out, ref, atol=1e-3, rtol=1e-4), (out, ref)

    # --- general same-shape path (row-wise fallback kernel) ---
    x2 = jax.random.normal(kx, (2, 4, 32), dtype=jnp.float32)
    y2 = jax.random.normal(ky, (2, 4, 32), dtype=jnp.float32)
    out2 = jax.block_until_ready(similarity(x2, y2, temp))
    dot2 = jnp.sum(x2 * y2, axis=-1)
    den2 = (jnp.maximum(jnp.linalg.norm(x2, axis=-1), _EPS) *
            jnp.maximum(jnp.linalg.norm(y2, axis=-1), _EPS))
    ref2 = dot2 / den2 / temp
    assert out2.shape == ref2.shape, (out2.shape, ref2.shape)
    assert jnp.allclose(out2, ref2, atol=1e-3, rtol=1e-4), (out2, ref2)

    # --- broadcast of a single vector (resident-row path, no materialization) ---
    y3 = jax.random.normal(ky, (32,), dtype=jnp.float32)
    out3 = jax.block_until_ready(similarity(x2, y3, temp))
    y3b = jnp.broadcast_to(y3, x2.shape)
    dot3 = jnp.sum(x2 * y3b, axis=-1)
    den3 = (jnp.maximum(jnp.linalg.norm(x2, axis=-1), _EPS) *
            jnp.maximum(jnp.linalg.norm(y3b, axis=-1), _EPS))
    ref3 = dot3 / den3 / temp
    assert out3.shape == ref3.shape, (out3.shape, ref3.shape)
    assert jnp.allclose(out3, ref3, atol=1e-3, rtol=1e-4), (out3, ref3)

    print("KERNEL_OK")
</pallas_src>

<mosaic_0001>
module attributes {stable_mosaic.version = 11 : i64} {
  func.func @_outer_kernel(%arg0: i32, %arg1: i32, %arg2: memref<8x32xf32, #tpu.memory_space<vmem>>, %arg3: memref<128x32xf32, #tpu.memory_space<vmem>>, %arg4: memref<8x1xf32, #tpu.memory_space<vmem>>, %arg5: memref<1x128xf32, #tpu.memory_space<vmem>>, %arg6: memref<8x128xf32, #tpu.memory_space<vmem>>) attributes {dimension_semantics = [#tpu.dimension_semantics<parallel>, #tpu.dimension_semantics<parallel>], iteration_bounds = array<i64: 1, 1>, scalar_prefetch = 0 : i64, scratch_operands = 0 : i64, tpu.core_type = #tpu.core_type<tc>, window_params = [{transform_indices = @transform_0, window_bounds = array<i64: 8, 32>}, {transform_indices = @transform_1, window_bounds = array<i64: 128, 32>}, {transform_indices = @transform_2, window_bounds = array<i64: 8, 1>}, {transform_indices = @transform_3, window_bounds = array<i64: 1, 128>}, {transform_indices = @transform_4, window_bounds = array<i64: 8, 128>}]} {
    %c0 = arith.constant 0 : index
    %c0_0 = arith.constant 0 : index
    %0 = vector.load %arg2[%c0, %c0_0] : memref<8x32xf32, #tpu.memory_space<vmem>>, vector<8x32xf32>
    %c0_1 = arith.constant 0 : index
    %c0_2 = arith.constant 0 : index
    %1 = vector.load %arg3[%c0_1, %c0_2] : memref<128x32xf32, #tpu.memory_space<vmem>>, vector<128x32xf32>
    %cst = arith.constant dense<0.000000e+00> : vector<8x128xf32>
    %2 = tpu.matmul %0, %1, %cst {dimension_numbers = #tpu.dot_dimension_numbers<[1], [1], [0], [0], [0, 0, 1, 0], [], []>} : vector<8x32xf32>, vector<128x32xf32>, vector<8x128xf32> -> vector<8x128xf32>
    %c0_3 = arith.constant 0 : index
    %c0_4 = arith.constant 0 : index
    %3 = vector.load %arg4[%c0_3, %c0_4] : memref<8x1xf32, #tpu.memory_space<vmem>>, vector<8x1xf32>
    %4 = vector.broadcast %3 : vector<8x1xf32> to vector<8x128xf32>
    %5 = arith.mulf %2, %4 : vector<8x128xf32>
    %c0_5 = arith.constant 0 : index
    %c0_6 = arith.constant 0 : index
    %6 = vector.load %arg5[%c0_5, %c0_6] : memref<1x128xf32, #tpu.memory_space<vmem>>, vector<1x128xf32>
    %7 = vector.broadcast %6 : vector<1x128xf32> to vector<8x128xf32>
    %8 = arith.mulf %5, %7 : vector<8x128xf32>
    %c0_7 = arith.constant 0 : index
    %c0_8 = arith.constant 0 : index
    %9 = vector.load %arg6[%c0_7, %c0_8] : memref<8x128xf32, #tpu.memory_space<vmem>>, vector<8x128xf32>
    tpu.vector_store %arg6[%c0_7, %c0_8], %8 {strides = array<i32>} : memref<8x128xf32, #tpu.memory_space<vmem>>, vector<8x128xf32>,
    return
  }
  func.func @transform_0(%arg0: i32, %arg1: i32) -> (i32, i32) {
    %c0_i32 = arith.constant 0 : i32
    %c0_i32_0 = arith.constant 0 : i32
    return %arg0, %c0_i32 : i32, i32
  }
  func.func @transform_1(%arg0: i32, %arg1: i32) -> (i32, i32) {
    %c0_i32 = arith.constant 0 : i32
    %c0_i32_0 = arith.constant 0 : i32
    return %arg1, %c0_i32 : i32, i32
  }
  func.func @transform_2(%arg0: i32, %arg1: i32) -> (i32, i32) {
    %c0_i32 = arith.constant 0 : i32
    %c0_i32_0 = arith.constant 0 : i32
    return %arg0, %c0_i32 : i32, i32
  }
  func.func @transform_3(%arg0: i32, %arg1: i32) -> (i32, i32) {
    %c0_i32 = arith.constant 0 : i32
    %c0_i32_0 = arith.constant 0 : i32
    return %c0_i32, %arg1 : i32, i32
  }
  func.func @transform_4(%arg0: i32, %arg1: i32) -> (i32, i32) {
    %c0_i32 = arith.constant 0 : i32
    return %arg0, %arg1 : i32, i32
  }
}

</mosaic_0001>

<llo_original>
// kernel: tpu_custom_call.1
$region0: #{tpu_custom_call.1}
  #allocation0 [shape = 'u32[]', space=smem, size = 0x4, offset = 0x4, fixed_abs, tag = 'smem constant byte address 0x4 - core index']
  #allocation1 [shape = 'u32[144,128]{1,0:T(1,128)}', space=vmem, size = 0x12000, scoped, tag = 'internal scratch']
  %s0 = inlined_call_operand.vmem [shape: f32[8,32], index: 0, kind: input, shape index: {}]
  %s1 = inlined_call_operand.vmem [shape: f32[128,32], index: 1, kind: input, shape index: {}]
  %s2 = inlined_call_operand.vmem [shape: f32[8,1], index: 2, kind: input, shape index: {}]
  %s3 = inlined_call_operand.vmem [shape: f32[1,128], index: 3, kind: input, shape index: {}]
  %s4 = inlined_call_operand.hbm [shape: f32[8,128], index: 4, kind: output, shape index: {}]
  %s5 = sld [smem:[#allocation0]]
  $region26: #{tpu_custom_call.1} parent=0
    _
  %s7 = ssub.s32 1, %s5
  %s8 = scalar_select 0, %s7, %s5
  $region1: #{tpu_custom_call.1} parent=0
    #allocation2 [shape = 'u8[4096]{0}', space=vmem, size = 0x1000, scoped, tag = 'output window, operand 0, single buffered']
    #allocation3 [shape = 's32[1]{0}', space=sflag, size = 0x4, scoped, tag = 'scoped memory for tpu_custom_call.1']
    %9 = vsyncpa [#allocation3], 0
    // Predicated region
    $region2: #{tpu_custom_call.1} parent=1 // pred_check
      _
    $region3: #{tpu_custom_call.1} parent=1 // pred_check_branch
      %11 = sbr.rel (0) target = $region5
    $region4: #{tpu_custom_call.1} parent=1 // pred_region
      _
    $region5: #{tpu_custom_call.1} parent=1 // pred_fallthru
      _
    // Predicated region
    $region6: #{tpu_custom_call.1} parent=1 // pred_check
      _
    $region7: #{tpu_custom_call.1} parent=1 // pred_check_branch
      %13 = sbr.rel (0) target = $region9
    $region8: #{tpu_custom_call.1} parent=1 // pred_region
      _
    $region9: #{tpu_custom_call.1} parent=1 // pred_fallthru
      _
    // Predicated region
    $region10: #{tpu_custom_call.1} parent=1 // pred_check
      _
    $region11: #{tpu_custom_call.1} parent=1 // pred_check_branch
      %15 = sbr.rel (0) target = $region13
    $region12: #{tpu_custom_call.1} parent=1 // pred_region
      _
    $region13: #{tpu_custom_call.1} parent=1 // pred_fallthru
      _
    // Predicated region
    $region14: #{tpu_custom_call.1} parent=1 // pred_check
      _
    $region15: #{tpu_custom_call.1} parent=1 // pred_check_branch
      %17 = sbr.rel (0) target = $region17
    $region16: #{tpu_custom_call.1} parent=1 // pred_region
      _
    $region17: #{tpu_custom_call.1} parent=1 // pred_fallthru
      _
    %v18 = vld [vmem:[%s0] sm:$0xff]
    %v19 = vld [vmem:[%s1] sm:$0xff]
    %v20 = vld [vmem:[%s1 + $0x8] sm:$0xff]
    %v21 = vld [vmem:[%s1 + $0x10] sm:$0xff]
    %v22 = vld [vmem:[%s1 + $0x18] sm:$0xff]
    %v23 = vld [vmem:[%s1 + $0x20] sm:$0xff]
    %v24 = vld [vmem:[%s1 + $0x28] sm:$0xff]
    %v25 = vld [vmem:[%s1 + $0x30] sm:$0xff]
    %v26 = vld [vmem:[%s1 + $0x38] sm:$0xff]
    %v27 = vld [vmem:[%s1 + $0x40] sm:$0xff]
    %v28 = vld [vmem:[%s1 + $0x48] sm:$0xff]
    %v29 = vld [vmem:[%s1 + $0x50] sm:$0xff]
    %v30 = vld [vmem:[%s1 + $0x58] sm:$0xff]
    %v31 = vld [vmem:[%s1 + $0x60] sm:$0xff]
    %v32 = vld [vmem:[%s1 + $0x68] sm:$0xff]
    %v33 = vld [vmem:[%s1 + $0x70] sm:$0xff]
    %v34 = vld [vmem:[%s1 + $0x78] sm:$0xff]
    %vm35 = vcmask 261120
    %v37 = vsel %vm35, %v18, 0
    %v40 = vsel %vm35, %v19, 0
    %v43 = vsel %vm35, %v20, 0
    %v46 = vsel %vm35, %v21, 0
    %v49 = vsel %vm35, %v22, 0
    %v52 = vsel %vm35, %v23, 0
    %v55 = vsel %vm35, %v24, 0
    %v58 = vsel %vm35, %v25, 0
    %v61 = vsel %vm35, %v26, 0
    %v64 = vsel %vm35, %v27, 0
    %v67 = vsel %vm35, %v28, 0
    %v70 = vsel %vm35, %v29, 0
    %v73 = vsel %vm35, %v30, 0
    %v76 = vsel %vm35, %v31, 0
    %v79 = vsel %vm35, %v32, 0
    %v82 = vsel %vm35, %v33, 0
    %v85 = vsel %vm35, %v34, 0
    %87 = vmatprep.subr.mxu0 0.0
    %88 = vmatpush1.xpose.msra.mxu0 %v85
    %89 = vmatprep.subr.mxu0 0.0
    %90 = vmatpush1.xpose.msra.mxu0 %v82
    %91 = vmatprep.subr.mxu0 0.0
    %92 = vmatpush1.xpose.msra.mxu0 %v79
    %93 = vmatprep.subr.mxu0 0.0
    %94 = vmatpush1.xpose.msra.mxu0 %v76
    %95 = vmatprep.subr.mxu0 0.0
    %96 = vmatpush1.xpose.msra.mxu0 %v73
    %97 = vmatprep.subr.mxu0 0.0
    %98 = vmatpush1.xpose.msra.mxu0 %v70
    %99 = vmatprep.subr.mxu0 0.0
    %100 = vmatpush1.xpose.msra.mxu0 %v67
    %101 = vmatprep.subr.mxu0 0.0
    %102 = vmatpush1.xpose.msra.mxu0 %v64
    %103 = vmatprep.subr.mxu0 0.0
    %104 = vmatpush1.xpose.msra.mxu0 %v61
    %105 = vmatprep.subr.mxu0 0.0
    %106 = vmatpush1.xpose.msra.mxu0 %v58
    %107 = vmatprep.subr.mxu0 0.0
    %108 = vmatpush1.xpose.msra.mxu0 %v55
    %109 = vmatprep.subr.mxu0 0.0
    %110 = vmatpush1.xpose.msra.mxu0 %v52
    %111 = vmatprep.subr.mxu0 0.0
    %112 = vmatpush1.xpose.msra.mxu0 %v49
    %113 = vmatprep.subr.mxu0 0.0
    %114 = vmatpush1.xpose.msra.mxu0 %v46
    %115 = vmatprep.subr.mxu0 0.0
    %116 = vmatpush1.xpose.msra.mxu0 %v43
    %117 = vmatprep.subr.mxu0 0.0
    %118 = vmatpush1.xpose.msra.mxu0 %v40
    %119 = vmatprep.subr.mxu0 0.0
    %120 = vmatpush2.xpose.msra.mxu0 0.0
    %121 = vmatprep.subr.mxu0 0.0
    %122 = vmatpush2.xpose.msra.mxu0 0.0
    %123 = vmatprep.subr.mxu0 0.0
    %124 = vmatpush2.xpose.msra.mxu0 0.0
    %125 = vmatprep.subr.mxu0 0.0
    %126 = vmatpush2.xpose.msra.mxu0 0.0
    %127 = vmatprep.subr.mxu0 0.0
    %128 = vmatpush2.xpose.msra.mxu0 0.0
    %129 = vmatprep.subr.mxu0 0.0
    %130 = vmatpush2.xpose.msra.mxu0 0.0
    %131 = vmatprep.subr.mxu0 0.0
    %132 = vmatpush2.xpose.msra.mxu0 0.0
    %133 = vmatprep.subr.mxu0 0.0
    %134 = vmatpush2.xpose.msra.mxu0 0.0
    %135 = vmatprep.subr.mxu0 0.0
    %136 = vmatpush2.xpose.msra.mxu0 0.0
    %137 = vmatprep.subr.mxu0 0.0
    %138 = vmatpush2.xpose.msra.mxu0 0.0
    %139 = vmatprep.subr.mxu0 0.0
    %140 = vmatpush2.xpose.msra.mxu0 0.0
    %141 = vmatprep.subr.mxu0 0.0
    %142 = vmatpush2.xpose.msra.mxu0 0.0
    %143 = vmatprep.subr.mxu0 0.0
    %144 = vmatpush2.xpose.msra.mxu0 0.0
    %145 = vmatprep.subr.mxu0 0.0
    %146 = vmatpush2.xpose.msra.mxu0 0.0
    %147 = vmatprep.subr.mxu0 0.0
    %148 = vmatpush2.xpose.msra.mxu0 0.0
    %149 = vmatprep.subr.mxu0 0.0
    %150 = vmatpush2.xpose.msra.mxu0 0.0
    %151 = vmatprep.mubr.f32.mxu0 0.0
    %152 = vmatmul.mubr.f32.gmra.mxu0 %v37
    %v153 = vpop.f32.mrf.mxu0
    %v154 = vadd.f32 0.0, %v153
    %v155 = vpop.f32.mrf.mxu0
    %156 = vdwg.mxu0
    %v157 = vld [vmem:[%s2] sm:$0xff]
    %159 = vset.pattern.permute.xlu0 0
    %160 = vperm.xlu0 %159, %v157
    %v161 = vpop.permute.xlu0 %160
    %v163 = vmul.f32 %v154, %v161
    %v164 = vld [vmem:[%s3] sm:$0x1]
    %v166 = vlaneseq
    %v167 = vshrl.u32 %v166, 7
    %v168 = vsub.s32 0, %v167
    %v169 = vrot.slane %v164, %v168
    %v171 = vmul.f32 %v163, %v169
    %172 = vst [vmem:[#allocation2] sm:$0xff] %v171
    // Predicated region
    $region18: #{tpu_custom_call.1} parent=1 // pred_check
      _
    $region19: #{tpu_custom_call.1} parent=1 // pred_check_branch
      %174 = sbr.rel (0) target = $region21
    $region20: #{tpu_custom_call.1} parent=1 // pred_region
      %s176 = ssub.s32 128, 128
      %177 = vsyncadd [#allocation3], %s176
      %s179 = sshll.u32 [#allocation2], 4
      %s180 = int_to_ptr.vmem [resolvable:$true] %s179
      %182 = dma.vmem_to_hbm [thread:$0]  %s180, 128, %s4, [#allocation3]
    $region21: #{tpu_custom_call.1} parent=1 // pred_fallthru
      _
    // Predicated region
    $region22: #{tpu_custom_call.1} parent=1 // pred_check
      _
    $region23: #{tpu_custom_call.1} parent=1 // pred_check_branch
      %184 = sbr.rel (0) target = $region25
    $region24: #{tpu_custom_call.1} parent=1 // pred_region
      %185 = dma.done [#allocation3], 128
    $region25: #{tpu_custom_call.1} parent=1 // pred_fallthru
      _
    %186 = vsyncpa [#allocation3], 1

</llo_original>
